<compile_context>
chip_gen: v6e
topology: v6e:2x2x1
jax: 0.10.0
libtpu: 0.0.40
codegen_flags: <defaults>
</compile_context>

<pallas_src>
import jax
import jax.numpy as jnp
from jax.experimental import pallas as pl
from jax.experimental.pallas import tpu as pltpu


def _relu_conv1x1_kernel(x_ref, w_ref, o_ref):
    # x_ref: (B_blk, C_in, HW) f32/bf16
    # w_ref: (CO_blk, C_in)    bf16
    # o_ref: (B_blk, CO_blk, HW) f32
    w = w_ref[...]                                    # hoisted: reused across batch loop
    for b in range(x_ref.shape[0]):                   # static unroll over batch block
        xb = jnp.maximum(x_ref[b], 0.0).astype(jnp.bfloat16)  # fused ReLU + bf16 cast
        o_ref[b] = jnp.dot(
            w, xb, preferred_element_type=jnp.float32
        ).astype(o_ref.dtype)


def prepare_weight(weight_oihw):
    """One-time weight reformat: (C_out, C_in, 1, 1) f32 -> (C_out, C_in) bf16."""
    c_out, c_in = weight_oihw.shape[0], weight_oihw.shape[1]
    return weight_oihw.reshape(c_out, c_in).astype(jnp.bfloat16)


def relu_conv1x1(x_nchw, w_prepared, *, batch_block=8):
    """ReLU followed by a 1x1 stride-1 conv (no bias).

    x_nchw:     [N, C_in, H, W]   float32 (bfloat16 also accepted -> halves x DMA)
    w_prepared: [C_out, C_in]     bfloat16 (from prepare_weight)
    returns:    [N, C_out, H, W]  same dtype as x_nchw
    """
    n, c_in, h, w = x_nchw.shape
    c_out = w_prepared.shape[0]
    hw = h * w

    # Free metadata reshape of the NCHW layout (no transpose).
    x_flat = x_nchw.reshape(n, c_in, hw)

    # Batch blocking (amortize per-grid-step overhead for N>1).
    b_blk = max(1, min(int(batch_block), n))
    nb = pl.cdiv(n, b_blk)

    # Split C_out across a second parallel grid axis so v7x's 2 TensorCores both
    # get work even when nb == 1 (single-batch inference). Each half must stay
    # sublane-aligned (divisible by 8).
    co_split = 2 if (c_out % 16 == 0) else 1
    co_blk = c_out // co_split

    itemsize_x = x_flat.dtype.itemsize
    flops = 2 * n * hw * c_in * c_out
    bytes_accessed = (
        n * c_in * hw * itemsize_x            # x: fetched once per batch block
        + nb * c_out * c_in * 2               # weight: bf16, re-fetched per batch block
        + n * c_out * hw * 4                  # output f32
    )

    out_flat = pl.pallas_call(
        _relu_conv1x1_kernel,
        out_shape=jax.ShapeDtypeStruct((n, c_out, hw), x_nchw.dtype),
        grid_spec=pltpu.PrefetchScalarGridSpec(
            num_scalar_prefetch=0,
            grid=(nb, co_split),
            in_specs=[
                # x block is identical across the co_split axis -> no re-fetch.
                pl.BlockSpec((b_blk, c_in, hw), lambda b, j: (b, 0, 0)),
                # weight split along C_out; stays VMEM-resident per core.
                pl.BlockSpec((co_blk, c_in), lambda b, j: (j, 0)),
            ],
            out_specs=pl.BlockSpec((b_blk, co_blk, hw), lambda b, j: (b, j, 0)),
        ),
        compiler_params=pltpu.CompilerParams(
            # Both axes independent: batch and C_out halves can be split across
            # v7x's two TensorCores; harmless on 1-TC chips.
            dimension_semantics=("parallel", "parallel"),
        ),
        cost_estimate=pl.CostEstimate(
            flops=flops, transcendentals=0, bytes_accessed=bytes_accessed
        ),
    )(x_flat, w_prepared)

    # Free reshape back to NCHW.
    return out_flat.reshape(n, c_out, h, w)


if __name__ == "__main__":
    # Shapes implied by the module's forward: x [1, 1120, 7, 7], W [128, 1120, 1, 1]
    key = jax.random.PRNGKey(0)
    kx, kw = jax.random.split(key)

    N, C_IN, H, W = 1, 1120, 7, 7
    C_OUT = 128

    x = jax.random.normal(kx, (N, C_IN, H, W), dtype=jnp.float32)
    bound = 1.0 / jnp.sqrt(jnp.float32(C_IN))
    weight = jax.random.uniform(
        kw, (C_OUT, C_IN, 1, 1), dtype=jnp.float32, minval=-bound, maxval=bound
    )

    # One-time weight prep (hoisted out of the per-call path).
    w_prep = jax.block_until_ready(prepare_weight(weight))

    fwd = jax.jit(relu_conv1x1)
    out = jax.block_until_ready(fwd(x, w_prep))

    # Reference in f32; tolerance loosened for bf16 operands + f32 accumulation.
    ref = jnp.einsum(
        "nchw,oc->nohw", jnp.maximum(x, 0.0), weight.reshape(C_OUT, C_IN)
    )
    assert out.shape == (N, C_OUT, H, W)
    assert jnp.allclose(out, ref, atol=3e-2, rtol=3e-2)

    print("KERNEL_OK")
</pallas_src>

<mosaic_0001>
module attributes {stable_mosaic.version = 11 : i64} {
  func.func @_relu_conv1x1_kernel(%arg0: i32, %arg1: i32, %arg2: memref<1x1120x49xf32, #tpu.memory_space<vmem>>, %arg3: memref<64x1120xbf16, #tpu.memory_space<vmem>>, %arg4: memref<1x64x49xf32, #tpu.memory_space<vmem>>) attributes {dimension_semantics = [#tpu.dimension_semantics<parallel>, #tpu.dimension_semantics<parallel>], iteration_bounds = array<i64: 1, 2>, scalar_prefetch = 0 : i64, scratch_operands = 0 : i64, tpu.core_type = #tpu.core_type<tc>, window_params = [{transform_indices = @transform_0, window_bounds = array<i64: 1, 1120, 49>}, {transform_indices = @transform_1, window_bounds = array<i64: 64, 1120>}, {transform_indices = @transform_2, window_bounds = array<i64: 1, 64, 49>}]} {
    %c0 = arith.constant 0 : index
    %c0_0 = arith.constant 0 : index
    %0 = vector.load %arg3[%c0, %c0_0] : memref<64x1120xbf16, #tpu.memory_space<vmem>>, vector<64x1120xbf16>
    %c0_1 = arith.constant 0 : index
    %c0_2 = arith.constant 0 : index
    %c0_3 = arith.constant 0 : index
    %1 = vector.load %arg2[%c0_1, %c0_2, %c0_3] : memref<1x1120x49xf32, #tpu.memory_space<vmem>>, vector<1x1120x49xf32>
    %2 = vector.shape_cast %1 : vector<1x1120x49xf32> to vector<1120x49xf32>
    %cst = arith.constant 0.000000e+00 : f32
    %3 = vector.broadcast %cst : f32 to vector<1120x49xf32>
    %4 = arith.maximumf %2, %3 : vector<1120x49xf32>
    %5 = arith.truncf %4 : vector<1120x49xf32> to vector<1120x49xbf16>
    %cst_4 = arith.constant dense<0.000000e+00> : vector<64x49xf32>
    %6 = tpu.matmul %0, %5, %cst_4 {dimension_numbers = #tpu.dot_dimension_numbers<[1], [0], [0], [1], [0, 0, 1, 1], [], []>} : vector<64x1120xbf16>, vector<1120x49xbf16>, vector<64x49xf32> -> vector<64x49xf32>
    %c0_5 = arith.constant 0 : index
    %c0_6 = arith.constant 0 : index
    %c0_7 = arith.constant 0 : index
    %7 = vector.load %arg4[%c0_5, %c0_6, %c0_7] : memref<1x64x49xf32, #tpu.memory_space<vmem>>, vector<1x64x49xf32>
    %8 = vector.shape_cast %7 : vector<1x64x49xf32> to vector<64x49xf32>
    %9 = vector.shape_cast %6 : vector<64x49xf32> to vector<1x64x49xf32>
    tpu.vector_store %arg4[%c0_5, %c0_6, %c0_7], %9 {strides = array<i32>} : memref<1x64x49xf32, #tpu.memory_space<vmem>>, vector<1x64x49xf32>,
    return
  }
  func.func @transform_0(%arg0: i32, %arg1: i32) -> (i32, i32, i32) {
    %c0_i32 = arith.constant 0 : i32
    %c0_i32_0 = arith.constant 0 : i32
    %c0_i32_1 = arith.constant 0 : i32
    return %arg0, %c0_i32, %c0_i32_0 : i32, i32, i32
  }
  func.func @transform_1(%arg0: i32, %arg1: i32) -> (i32, i32) {
    %c0_i32 = arith.constant 0 : i32
    %c0_i32_0 = arith.constant 0 : i32
    return %arg1, %c0_i32 : i32, i32
  }
  func.func @transform_2(%arg0: i32, %arg1: i32) -> (i32, i32, i32) {
    %c0_i32 = arith.constant 0 : i32
    %c0_i32_0 = arith.constant 0 : i32
    return %arg0, %arg1, %c0_i32 : i32, i32, i32
  }
}

</mosaic_0001>

<llo_original>
// kernel: relu_conv1x1.1
$region0: #{relu_conv1x1.1}
  #allocation0 [shape = 'u32[]', space=smem, size = 0x4, offset = 0x4, fixed_abs, tag = 'smem constant byte address 0x4 - core index']
  #allocation1 [shape = 'u32[144,128]{1,0:T(1,128)}', space=vmem, size = 0x12000, scoped, tag = 'internal scratch']
  %s0 = inlined_call_operand.vmem [shape: f32[1,1120,49], index: 0, kind: input, shape index: {}]
  %s1 = inlined_call_operand.vmem [shape: bf16[128,1120], index: 1, kind: input, shape index: {}]
  %s2 = inlined_call_operand.vmem [shape: f32[1,128,49], index: 2, kind: output, shape index: {}]
  %s3 = sld [smem:[#allocation0]]
  $region41: #{relu_conv1x1.1} parent=0
    _
  %s5 = ssub.s32 1, %s3
  %s6 = scalar_select 0, %s5, %s3
  loop: start=0, step=1, limit=4
  $region2: #{relu_conv1x1.1} parent=0 // loop_pre_header
    _
  $region3: #{relu_conv1x1.1} parent=0 // loop_header
    %s8 = sphi 0, %s12
    %p9 = scmp.ge.s32.totalorder %s8, 4
    %s15 = sphi 0, %s27
    %s16 = sphi 0, %s23
    %s17 = sphi 0, %s15
    %s18 = sphi 0, %s16
    %s19 = sphi 0, %s17
    %s20 = sphi 0, %s18
    %s30 = sphi 0, %s32
    %s33 = sphi 0, %s30
    %s34 = sphi 0, %s33
    %s50 = sphi 0, %s34
    %s56 = sphi 0, %s58
    %s59 = sphi 0, %s56
    %s60 = sphi 0, %s59
    %s76 = sphi 0, %s60
    %s84 = sphi 0, %s86
    %s87 = sphi 0, %s84
    %s88 = sphi 0, %s87
    %s104 = sphi 0, %s88
  $region4: #{relu_conv1x1.1} parent=0 // loop_header_branch
    %11 = sbr.rel (%p9) target = $region8
  $region5: #{relu_conv1x1.1} parent=0 // loop_body
    %s13 = ssub.s32 %s8, 1
    %s14 = ssub.s32 %s8, 2
    %s21 = sadd.s32 1, %s16
    %p22 = scmp.ge.s32.totalorder %s21, 2
    %s23 = scalar_select %p22, 0, %s21
    %s24 = sadd.s32 1, %s15
    %s25 = scalar_select %p22, %s24, %s15
    %p26 = scmp.ge.s32.totalorder %s25, 1
    %s27 = scalar_select %p26, 0, %s25
    %s28 = ssub.s32 %s15, %s27
    %p29 = scmp.eq.s32.totalorder %s28, 0
    %s31 = sadd.s32 %s30, 1
    %s32 = scalar_select %p29, %s30, %s31
    %p35 = pneg %p29
    %p36 = scmp.eq.s32.totalorder %s8, 1
    %p37 = por %p35, %p36
    %p38 = scmp.ne.s32.totalorder %s30, %s33
    %p39 = scmp.eq.s32.totalorder %s8, 0
    %p40 = por %p38, %p39
    %p41 = scmp.ne.s32.totalorder %s30, %s33
    %p42 = scmp.eq.s32.totalorder %s13, 1
    %p43 = por %p41, %p42
    %p44 = scmp.ne.s32.totalorder %s33, %s34
    %p45 = scmp.eq.s32.totalorder %s13, 0
    %p46 = por %p44, %p45
    %p47 = scmp.ne.s32.totalorder %s33, %s34
    %p48 = scmp.eq.s32.totalorder %s14, 1
    %p49 = por %p47, %p48
    %p51 = scmp.ne.s32.totalorder %s34, %s50
    %p52 = scmp.eq.s32.totalorder %s14, 0
    %p53 = por %p51, %p52
    %s54 = ssub.s32 %s16, %s23
    %p55 = scmp.eq.s32.totalorder %s54, 0
    %s57 = sadd.s32 %s56, 1
    %s58 = scalar_select %p55, %s56, %s57
    %p61 = pneg %p55
    %p62 = scmp.eq.s32.totalorder %s8, 1
    %p63 = por %p61, %p62
    %p64 = scmp.ne.s32.totalorder %s56, %s59
    %p65 = scmp.eq.s32.totalorder %s8, 0
    %p66 = por %p64, %p65
    %p67 = scmp.ne.s32.totalorder %s56, %s59
    %p68 = scmp.eq.s32.totalorder %s13, 1
    %p69 = por %p67, %p68
    %p70 = scmp.ne.s32.totalorder %s59, %s60
    %p71 = scmp.eq.s32.totalorder %s13, 0
    %p72 = por %p70, %p71
    %p73 = scmp.ne.s32.totalorder %s59, %s60
    %p74 = scmp.eq.s32.totalorder %s14, 1
    %p75 = por %p73, %p74
    %p77 = scmp.ne.s32.totalorder %s60, %s76
    %p78 = scmp.eq.s32.totalorder %s14, 0
    %p79 = por %p77, %p78
    %s80 = ssub.s32 %s15, %s27
    %s81 = ssub.s32 %s16, %s23
    %s82 = sor.u32 %s80, %s81
    %p83 = scmp.eq.s32.totalorder %s82, 0
    %s85 = sadd.s32 %s84, 1
    %s86 = scalar_select %p83, %s84, %s85
    %p89 = pneg %p83
    %p90 = scmp.eq.s32.totalorder %s8, 1
    %p91 = por %p89, %p90
    %p92 = scmp.ne.s32.totalorder %s84, %s87
    %p93 = scmp.eq.s32.totalorder %s8, 0
    %p94 = por %p92, %p93
    %p95 = scmp.ne.s32.totalorder %s84, %s87
    %p96 = scmp.eq.s32.totalorder %s13, 1
    %p97 = por %p95, %p96
    %p98 = scmp.ne.s32.totalorder %s87, %s88
    %p99 = scmp.eq.s32.totalorder %s13, 0
    %p100 = por %p98, %p99
    %p101 = scmp.ne.s32.totalorder %s87, %s88
    %p102 = scmp.eq.s32.totalorder %s14, 1
    %p103 = por %p101, %p102
    %p105 = scmp.ne.s32.totalorder %s88, %s104
    %p106 = scmp.eq.s32.totalorder %s14, 0
    %p107 = por %p105, %p106
    %p108 = scmp.le.s32.totalorder 1, %s8
    %p109 = scmp.lt.s32.totalorder %s8, 3
    %p110 = pnand %p108, %p109
    %p111 = pneg %p110
    // Predicated region
    $region9: #{relu_conv1x1.1} parent=5 // pred_check
      _
    $region10: #{relu_conv1x1.1} parent=5 // pred_check_branch
      %113 = sbr.rel (%p110) target = $region12
    $region11: #{relu_conv1x1.1} parent=5 // pred_region
      %s114 = ssub.s32 %s8, 1
      // Predicated region
      $region13: #{relu_conv1x1.1} parent=11 // pred_check
        %p115 = pneg %p46
      $region14: #{relu_conv1x1.1} parent=11 // pred_check_branch
        %117 = sbr.rel (%p115) target = $region16
      $region15: #{relu_conv1x1.1} parent=11 // pred_region
        %p118 = scmp.lt.s32.totalorder %s17, 0
        %s119 = scalar_select %p118, %s17, 0
        %s120 = smul.addr %s119, 140
        %s121 = smul.addr %s120, 8
        %s122 = scalar_lea.vmem %s0, %s121
      $region16: #{relu_conv1x1.1} parent=11 // pred_fallthru
        _
    $region12: #{relu_conv1x1.1} parent=5 // pred_fallthru
      _
    %p123 = scmp.lt.s32.totalorder %s8, 2
    // Predicated region
    $region17: #{relu_conv1x1.1} parent=5 // pred_check
      %p124 = pneg %p123
    $region18: #{relu_conv1x1.1} parent=5 // pred_check_branch
      %126 = sbr.rel (%p124) target = $region20
    $region19: #{relu_conv1x1.1} parent=5 // pred_region
      // Predicated region
      $region21: #{relu_conv1x1.1} parent=19 // pred_check
        %p127 = pneg %p66
      $region22: #{relu_conv1x1.1} parent=19 // pred_check_branch
        %129 = sbr.rel (%p127) target = $region24
      $region23: #{relu_conv1x1.1} parent=19 // pred_region
        %s130 = smul.u32 8, %s16
        %p131 = scmp.lt.s32.totalorder %s130, 15
        %s132 = scalar_select %p131, %s130, 15
        %s133 = smul.addr %s132, 9
        %s134 = smul.addr %s133, 4
        %s135 = scalar_lea.vmem %s1, %s134
        %s136 = smul.u32 8, %s16
      $region24: #{relu_conv1x1.1} parent=19 // pred_fallthru
        _
    $region20: #{relu_conv1x1.1} parent=5 // pred_fallthru
      _
    %p137 = scmp.le.s32.totalorder 1, %s8
    %p138 = scmp.lt.s32.totalorder %s8, 3
    %p139 = pnand %p137, %p138
    %p140 = pneg %p139
    // Predicated region
    $region25: #{relu_conv1x1.1} parent=5 // pred_check
      _
    $region26: #{relu_conv1x1.1} parent=5 // pred_check_branch
      %142 = sbr.rel (%p139) target = $region28
    $region27: #{relu_conv1x1.1} parent=5 // pred_region
      %s143 = ssub.s32 %s8, 1
      %p144 = scmp.lt.s32.totalorder %s17, 0
      %s145 = scalar_select %p144, %s17, 0
      %s146 = smul.addr %s145, 140
      %s147 = smul.addr %s146, 8
      %s148 = scalar_lea.vmem %s0, %s147
      %p149 = pneg %p46
      %p150 = pneg %p43
      %s151 = smul.u32 8, %s18
      %p152 = scmp.lt.s32.totalorder %s151, 15
      %s153 = scalar_select %p152, %s151, 15
      %s154 = smul.addr %s153, 9
      %s155 = smul.addr %s154, 4
      %s156 = scalar_lea.vmem %s1, %s155
      %p157 = pneg %p72
      %p158 = pneg %p69
      %p159 = pneg %p100
      %p160 = pneg %p97
      %s161 = smul.u32 8, %s18
      %p162 = scmp.lt.s32.totalorder %s17, 0
      %s163 = scalar_select %p162, %s17, 0
      %p164 = scmp.lt.s32.totalorder %s161, 15
      %s165 = scalar_select %p164, %s161, 15
      %s166 = smul.addr %s163, 16
      %s167 = sadd.s32 %s165, %s166
      %s168 = smul.addr %s167, 8
      %s169 = scalar_lea.vmem %s2, %s168
      %p170 = scmp.lt.s32.totalorder %s17, 0
      %s171 = scalar_select %p170, %s17, 0
      %s172 = smul.addr %s171, 140
      %s173 = smul.addr %s172, 8
      %s174 = scalar_lea.vmem %s0, %s173
      %s175 = smul.u32 8, %s18
      %p176 = scmp.lt.s32.totalorder %s175, 15
      %s177 = scalar_select %p176, %s175, 15
      %s178 = smul.addr %s177, 9
      %s179 = smul.addr %s178, 4
      %s180 = scalar_lea.vmem %s1, %s179
      %s181 = smul.u32 8, %s18
      %s182 = smul.u32 8, %s18
      %p183 = scmp.lt.s32.totalorder %s17, 0
      %s184 = scalar_select %p183, %s17, 0
      %p185 = scmp.lt.s32.totalorder %s182, 15
      %s186 = scalar_select %p185, %s182, 15
      %s187 = smul.addr %s184, 16
      %s188 = sadd.s32 %s186, %s187
      %s189 = smul.addr %s188, 8
      %s190 = scalar_lea.vmem %s2, %s189
      %s191 = smul.u32 8, %s18
      %v193 = vld [vmem:[%s180] sm:$0xff]
      %v194 = vld [vmem:[%s180 + $0x8] sm:$0xff]
      %v195 = vld [vmem:[%s180 + $0x10] sm:$0xff]
      %v196 = vld [vmem:[%s180 + $0x18] sm:$0xff]
      %v197 = vld [vmem:[%s180 + $0x20] sm:$0xf]
      %v198 = vld [vmem:[%s180 + $0x24] sm:$0xff]
      %v199 = vld [vmem:[%s180 + $0x2c] sm:$0xff]
      %v200 = vld [vmem:[%s180 + $0x34] sm:$0xff]
      %v201 = vld [vmem:[%s180 + $0x3c] sm:$0xff]
      %v202 = vld [vmem:[%s180 + $0x44] sm:$0xf]
      %v203 = vld [vmem:[%s180 + $0x48] sm:$0xff]
      %v204 = vld [vmem:[%s180 + $0x50] sm:$0xff]
      %v205 = vld [vmem:[%s180 + $0x58] sm:$0xff]
      %v206 = vld [vmem:[%s180 + $0x60] sm:$0xff]
      %v207 = vld [vmem:[%s180 + $0x68] sm:$0xf]
      %v208 = vld [vmem:[%s180 + $0x6c] sm:$0xff]
      %v209 = vld [vmem:[%s180 + $0x74] sm:$0xff]
      %v210 = vld [vmem:[%s180 + $0x7c] sm:$0xff]
      %v211 = vld [vmem:[%s180 + $0x84] sm:$0xff]
      %v212 = vld [vmem:[%s180 + $0x8c] sm:$0xf]
      %v213 = vld [vmem:[%s180 + $0x90] sm:$0xff]
      %v214 = vld [vmem:[%s180 + $0x98] sm:$0xff]
      %v215 = vld [vmem:[%s180 + $0xa0] sm:$0xff]
      %v216 = vld [vmem:[%s180 + $0xa8] sm:$0xff]
      %v217 = vld [vmem:[%s180 + $0xb0] sm:$0xf]
      %v218 = vld [vmem:[%s180 + $0xb4] sm:$0xff]
      %v219 = vld [vmem:[%s180 + $0xbc] sm:$0xff]
      %v220 = vld [vmem:[%s180 + $0xc4] sm:$0xff]
      %v221 = vld [vmem:[%s180 + $0xcc] sm:$0xff]
      %v222 = vld [vmem:[%s180 + $0xd4] sm:$0xf]
      %v223 = vld [vmem:[%s180 + $0xd8] sm:$0xff]
      %v224 = vld [vmem:[%s180 + $0xe0] sm:$0xff]
      %v225 = vld [vmem:[%s180 + $0xe8] sm:$0xff]
      %v226 = vld [vmem:[%s180 + $0xf0] sm:$0xff]
      %v227 = vld [vmem:[%s180 + $0xf8] sm:$0xf]
      %v228 = vld [vmem:[%s180 + $0xfc] sm:$0xff]
      %v229 = vld [vmem:[%s180 + $0x104] sm:$0xff]
      %v230 = vld [vmem:[%s180 + $0x10c] sm:$0xff]
      %v231 = vld [vmem:[%s180 + $0x114] sm:$0xff]
      %v232 = vld [vmem:[%s180 + $0x11c] sm:$0xf]
      %v233 = vld [vmem:[%s174] sm:$0xff]
      %v234 = vld [vmem:[%s174 + $0x8] sm:$0xff]
      %v235 = vld [vmem:[%s174 + $0x10] sm:$0xff]
      %v236 = vld [vmem:[%s174 + $0x18] sm:$0xff]
      %v237 = vld [vmem:[%s174 + $0x20] sm:$0xff]
      %v238 = vld [vmem:[%s174 + $0x28] sm:$0xff]
      %v239 = vld [vmem:[%s174 + $0x30] sm:$0xff]
      %v240 = vld [vmem:[%s174 + $0x38] sm:$0xff]
      %v241 = vld [vmem:[%s174 + $0x40] sm:$0xff]
      %v242 = vld [vmem:[%s174 + $0x48] sm:$0xff]
      %v243 = vld [vmem:[%s174 + $0x50] sm:$0xff]
      %v244 = vld [vmem:[%s174 + $0x58] sm:$0xff]
      %v245 = vld [vmem:[%s174 + $0x60] sm:$0xff]
      %v246 = vld [vmem:[%s174 + $0x68] sm:$0xff]
      %v247 = vld [vmem:[%s174 + $0x70] sm:$0xff]
      %v248 = vld [vmem:[%s174 + $0x78] sm:$0xff]
      %v249 = vld [vmem:[%s174 + $0x80] sm:$0xff]
      %v250 = vld [vmem:[%s174 + $0x88] sm:$0xff]
      %v251 = vld [vmem:[%s174 + $0x90] sm:$0xff]
      %v252 = vld [vmem:[%s174 + $0x98] sm:$0xff]
      %v253 = vld [vmem:[%s174 + $0xa0] sm:$0xff]
      %v254 = vld [vmem:[%s174 + $0xa8] sm:$0xff]
      %v255 = vld [vmem:[%s174 + $0xb0] sm:$0xff]
      %v256 = vld [vmem:[%s174 + $0xb8] sm:$0xff]
      %v257 = vld [vmem:[%s174 + $0xc0] sm:$0xff]
      %v258 = vld [vmem:[%s174 + $0xc8] sm:$0xff]
      %v259 = vld [vmem:[%s174 + $0xd0] sm:$0xff]
      %v260 = vld [vmem:[%s174 + $0xd8] sm:$0xff]
      %v261 = vld [vmem:[%s174 + $0xe0] sm:$0xff]
      %v262 = vld [vmem:[%s174 + $0xe8] sm:$0xff]
      %v263 = vld [vmem:[%s174 + $0xf0] sm:$0xff]
      %v264 = vld [vmem:[%s174 + $0xf8] sm:$0xff]
      %v265 = vld [vmem:[%s174 + $0x100] sm:$0xff]
      %v266 = vld [vmem:[%s174 + $0x108] sm:$0xff]
      %v267 = vld [vmem:[%s174 + $0x110] sm:$0xff]
      %v268 = vld [vmem:[%s174 + $0x118] sm:$0xff]
      %v269 = vld [vmem:[%s174 + $0x120] sm:$0xff]
      %v270 = vld [vmem:[%s174 + $0x128] sm:$0xff]
      %v271 = vld [vmem:[%s174 + $0x130] sm:$0xff]
      %v272 = vld [vmem:[%s174 + $0x138] sm:$0xff]
      %v273 = vld [vmem:[%s174 + $0x140] sm:$0xff]
      %v274 = vld [vmem:[%s174 + $0x148] sm:$0xff]
      %v275 = vld [vmem:[%s174 + $0x150] sm:$0xff]
      %v276 = vld [vmem:[%s174 + $0x158] sm:$0xff]
      %v277 = vld [vmem:[%s174 + $0x160] sm:$0xff]
      %v278 = vld [vmem:[%s174 + $0x168] sm:$0xff]
      %v279 = vld [vmem:[%s174 + $0x170] sm:$0xff]
      %v280 = vld [vmem:[%s174 + $0x178] sm:$0xff]
      %v281 = vld [vmem:[%s174 + $0x180] sm:$0xff]
      %v282 = vld [vmem:[%s174 + $0x188] sm:$0xff]
      %v283 = vld [vmem:[%s174 + $0x190] sm:$0xff]
      %v284 = vld [vmem:[%s174 + $0x198] sm:$0xff]
      %v285 = vld [vmem:[%s174 + $0x1a0] sm:$0xff]
      %v286 = vld [vmem:[%s174 + $0x1a8] sm:$0xff]
      %v287 = vld [vmem:[%s174 + $0x1b0] sm:$0xff]
      %v288 = vld [vmem:[%s174 + $0x1b8] sm:$0xff]
      %v289 = vld [vmem:[%s174 + $0x1c0] sm:$0xff]
      %v290 = vld [vmem:[%s174 + $0x1c8] sm:$0xff]
      %v291 = vld [vmem:[%s174 + $0x1d0] sm:$0xff]
      %v292 = vld [vmem:[%s174 + $0x1d8] sm:$0xff]
      %v293 = vld [vmem:[%s174 + $0x1e0] sm:$0xff]
      %v294 = vld [vmem:[%s174 + $0x1e8] sm:$0xff]
      %v295 = vld [vmem:[%s174 + $0x1f0] sm:$0xff]
      %v296 = vld [vmem:[%s174 + $0x1f8] sm:$0xff]
      %v297 = vld [vmem:[%s174 + $0x200] sm:$0xff]
      %v298 = vld [vmem:[%s174 + $0x208] sm:$0xff]
      %v299 = vld [vmem:[%s174 + $0x210] sm:$0xff]
      %v300 = vld [vmem:[%s174 + $0x218] sm:$0xff]
      %v301 = vld [vmem:[%s174 + $0x220] sm:$0xff]
      %v302 = vld [vmem:[%s174 + $0x228] sm:$0xff]
      %v303 = vld [vmem:[%s174 + $0x230] sm:$0xff]
      %v304 = vld [vmem:[%s174 + $0x238] sm:$0xff]
      %v305 = vld [vmem:[%s174 + $0x240] sm:$0xff]
      %v306 = vld [vmem:[%s174 + $0x248] sm:$0xff]
      %v307 = vld [vmem:[%s174 + $0x250] sm:$0xff]
      %v308 = vld [vmem:[%s174 + $0x258] sm:$0xff]
      %v309 = vld [vmem:[%s174 + $0x260] sm:$0xff]
      %v310 = vld [vmem:[%s174 + $0x268] sm:$0xff]
      %v311 = vld [vmem:[%s174 + $0x270] sm:$0xff]
      %v312 = vld [vmem:[%s174 + $0x278] sm:$0xff]
      %v313 = vld [vmem:[%s174 + $0x280] sm:$0xff]
      %v314 = vld [vmem:[%s174 + $0x288] sm:$0xff]
      %v315 = vld [vmem:[%s174 + $0x290] sm:$0xff]
      %v316 = vld [vmem:[%s174 + $0x298] sm:$0xff]
      %v317 = vld [vmem:[%s174 + $0x2a0] sm:$0xff]
      %v318 = vld [vmem:[%s174 + $0x2a8] sm:$0xff]
      %v319 = vld [vmem:[%s174 + $0x2b0] sm:$0xff]
      %v320 = vld [vmem:[%s174 + $0x2b8] sm:$0xff]
      %v321 = vld [vmem:[%s174 + $0x2c0] sm:$0xff]
      %v322 = vld [vmem:[%s174 + $0x2c8] sm:$0xff]
      %v323 = vld [vmem:[%s174 + $0x2d0] sm:$0xff]
      %v324 = vld [vmem:[%s174 + $0x2d8] sm:$0xff]
      %v325 = vld [vmem:[%s174 + $0x2e0] sm:$0xff]
      %v326 = vld [vmem:[%s174 + $0x2e8] sm:$0xff]
      %v327 = vld [vmem:[%s174 + $0x2f0] sm:$0xff]
      %v328 = vld [vmem:[%s174 + $0x2f8] sm:$0xff]
      %v329 = vld [vmem:[%s174 + $0x300] sm:$0xff]
      %v330 = vld [vmem:[%s174 + $0x308] sm:$0xff]
      %v331 = vld [vmem:[%s174 + $0x310] sm:$0xff]
      %v332 = vld [vmem:[%s174 + $0x318] sm:$0xff]
      %v333 = vld [vmem:[%s174 + $0x320] sm:$0xff]
      %v334 = vld [vmem:[%s174 + $0x328] sm:$0xff]
      %v335 = vld [vmem:[%s174 + $0x330] sm:$0xff]
      %v336 = vld [vmem:[%s174 + $0x338] sm:$0xff]
      %v337 = vld [vmem:[%s174 + $0x340] sm:$0xff]
      %v338 = vld [vmem:[%s174 + $0x348] sm:$0xff]
      %v339 = vld [vmem:[%s174 + $0x350] sm:$0xff]
      %v340 = vld [vmem:[%s174 + $0x358] sm:$0xff]
      %v341 = vld [vmem:[%s174 + $0x360] sm:$0xff]
      %v342 = vld [vmem:[%s174 + $0x368] sm:$0xff]
      %v343 = vld [vmem:[%s174 + $0x370] sm:$0xff]
      %v344 = vld [vmem:[%s174 + $0x378] sm:$0xff]
      %v345 = vld [vmem:[%s174 + $0x380] sm:$0xff]
      %v346 = vld [vmem:[%s174 + $0x388] sm:$0xff]
      %v347 = vld [vmem:[%s174 + $0x390] sm:$0xff]
      %v348 = vld [vmem:[%s174 + $0x398] sm:$0xff]
      %v349 = vld [vmem:[%s174 + $0x3a0] sm:$0xff]
      %v350 = vld [vmem:[%s174 + $0x3a8] sm:$0xff]
      %v351 = vld [vmem:[%s174 + $0x3b0] sm:$0xff]
      %v352 = vld [vmem:[%s174 + $0x3b8] sm:$0xff]
      %v353 = vld [vmem:[%s174 + $0x3c0] sm:$0xff]
      %v354 = vld [vmem:[%s174 + $0x3c8] sm:$0xff]
      %v355 = vld [vmem:[%s174 + $0x3d0] sm:$0xff]
      %v356 = vld [vmem:[%s174 + $0x3d8] sm:$0xff]
      %v357 = vld [vmem:[%s174 + $0x3e0] sm:$0xff]
      %v358 = vld [vmem:[%s174 + $0x3e8] sm:$0xff]
      %v359 = vld [vmem:[%s174 + $0x3f0] sm:$0xff]
      %v360 = vld [vmem:[%s174 + $0x3f8] sm:$0xff]
      %v361 = vld [vmem:[%s174 + $0x400] sm:$0xff]
      %v362 = vld [vmem:[%s174 + $0x408] sm:$0xff]
      %v363 = vld [vmem:[%s174 + $0x410] sm:$0xff]
      %v364 = vld [vmem:[%s174 + $0x418] sm:$0xff]
      %v365 = vld [vmem:[%s174 + $0x420] sm:$0xff]
      %v366 = vld [vmem:[%s174 + $0x428] sm:$0xff]
      %v367 = vld [vmem:[%s174 + $0x430] sm:$0xff]
      %v368 = vld [vmem:[%s174 + $0x438] sm:$0xff]
      %v369 = vld [vmem:[%s174 + $0x440] sm:$0xff]
      %v370 = vld [vmem:[%s174 + $0x448] sm:$0xff]
      %v371 = vld [vmem:[%s174 + $0x450] sm:$0xff]
      %v372 = vld [vmem:[%s174 + $0x458] sm:$0xff]
      %v373 = vmax.f32 %v233, 0.0
      %v374 = vmax.f32 %v234, 0.0
      %v375 = vmax.f32 %v235, 0.0
      %v376 = vmax.f32 %v236, 0.0
      %v377 = vmax.f32 %v237, 0.0
      %v378 = vmax.f32 %v238, 0.0
      %v379 = vmax.f32 %v239, 0.0
      %v380 = vmax.f32 %v240, 0.0
      %v381 = vmax.f32 %v241, 0.0
      %v382 = vmax.f32 %v242, 0.0
      %v383 = vmax.f32 %v243, 0.0
      %v384 = vmax.f32 %v244, 0.0
      %v385 = vmax.f32 %v245, 0.0
      %v386 = vmax.f32 %v246, 0.0
      %v387 = vmax.f32 %v247, 0.0
      %v388 = vmax.f32 %v248, 0.0
      %v389 = vmax.f32 %v249, 0.0
      %v390 = vmax.f32 %v250, 0.0
      %v391 = vmax.f32 %v251, 0.0
      %v392 = vmax.f32 %v252, 0.0
      %v393 = vmax.f32 %v253, 0.0
      %v394 = vmax.f32 %v254, 0.0
      %v395 = vmax.f32 %v255, 0.0
      %v396 = vmax.f32 %v256, 0.0
      %v397 = vmax.f32 %v257, 0.0
      %v398 = vmax.f32 %v258, 0.0
      %v399 = vmax.f32 %v259, 0.0
      %v400 = vmax.f32 %v260, 0.0
      %v401 = vmax.f32 %v261, 0.0
      %v402 = vmax.f32 %v262, 0.0
      %v403 = vmax.f32 %v263, 0.0
      %v404 = vmax.f32 %v264, 0.0
      %v405 = vmax.f32 %v265, 0.0
      %v406 = vmax.f32 %v266, 0.0
      %v407 = vmax.f32 %v267, 0.0
      %v408 = vmax.f32 %v268, 0.0
      %v409 = vmax.f32 %v269, 0.0
      %v410 = vmax.f32 %v270, 0.0
      %v411 = vmax.f32 %v271, 0.0
      %v412 = vmax.f32 %v272, 0.0
      %v413 = vmax.f32 %v273, 0.0
      %v414 = vmax.f32 %v274, 0.0
      %v415 = vmax.f32 %v275, 0.0
      %v416 = vmax.f32 %v276, 0.0
      %v417 = vmax.f32 %v277, 0.0
      %v418 = vmax.f32 %v278, 0.0
      %v419 = vmax.f32 %v279, 0.0
      %v420 = vmax.f32 %v280, 0.0
      %v421 = vmax.f32 %v281, 0.0
      %v422 = vmax.f32 %v282, 0.0
      %v423 = vmax.f32 %v283, 0.0
      %v424 = vmax.f32 %v284, 0.0
      %v425 = vmax.f32 %v285, 0.0
      %v426 = vmax.f32 %v286, 0.0
      %v427 = vmax.f32 %v287, 0.0
      %v428 = vmax.f32 %v288, 0.0
      %v429 = vmax.f32 %v289, 0.0
      %v430 = vmax.f32 %v290, 0.0
      %v431 = vmax.f32 %v291, 0.0
      %v432 = vmax.f32 %v292, 0.0
      %v433 = vmax.f32 %v293, 0.0
      %v434 = vmax.f32 %v294, 0.0
      %v435 = vmax.f32 %v295, 0.0
      %v436 = vmax.f32 %v296, 0.0
      %v437 = vmax.f32 %v297, 0.0
      %v438 = vmax.f32 %v298, 0.0
      %v439 = vmax.f32 %v299, 0.0
      %v440 = vmax.f32 %v300, 0.0
      %v441 = vmax.f32 %v301, 0.0
      %v442 = vmax.f32 %v302, 0.0
      %v443 = vmax.f32 %v303, 0.0
      %v444 = vmax.f32 %v304, 0.0
      %v445 = vmax.f32 %v305, 0.0
      %v446 = vmax.f32 %v306, 0.0
      %v447 = vmax.f32 %v307, 0.0
      %v448 = vmax.f32 %v308, 0.0
      %v449 = vmax.f32 %v309, 0.0
      %v450 = vmax.f32 %v310, 0.0
      %v451 = vmax.f32 %v311, 0.0
      %v452 = vmax.f32 %v312, 0.0
      %v453 = vmax.f32 %v313, 0.0
      %v454 = vmax.f32 %v314, 0.0
      %v455 = vmax.f32 %v315, 0.0
      %v456 = vmax.f32 %v316, 0.0
      %v457 = vmax.f32 %v317, 0.0
      %v458 = vmax.f32 %v318, 0.0
      %v459 = vmax.f32 %v319, 0.0
      %v460 = vmax.f32 %v320, 0.0
      %v461 = vmax.f32 %v321, 0.0
      %v462 = vmax.f32 %v322, 0.0
      %v463 = vmax.f32 %v323, 0.0
      %v464 = vmax.f32 %v324, 0.0
      %v465 = vmax.f32 %v325, 0.0
      %v466 = vmax.f32 %v326, 0.0
      %v467 = vmax.f32 %v327, 0.0
      %v468 = vmax.f32 %v328, 0.0
      %v469 = vmax.f32 %v329, 0.0
      %v470 = vmax.f32 %v330, 0.0
      %v471 = vmax.f32 %v331, 0.0
      %v472 = vmax.f32 %v332, 0.0
      %v473 = vmax.f32 %v333, 0.0
      %v474 = vmax.f32 %v334, 0.0
      %v475 = vmax.f32 %v335, 0.0
      %v476 = vmax.f32 %v336, 0.0
      %v477 = vmax.f32 %v337, 0.0
      %v478 = vmax.f32 %v338, 0.0
      %v479 = vmax.f32 %v339, 0.0
      %v480 = vmax.f32 %v340, 0.0
      %v481 = vmax.f32 %v341, 0.0
      %v482 = vmax.f32 %v342, 0.0
      %v483 = vmax.f32 %v343, 0.0
      %v484 = vmax.f32 %v344, 0.0
      %v485 = vmax.f32 %v345, 0.0
      %v486 = vmax.f32 %v346, 0.0
      %v487 = vmax.f32 %v347, 0.0
      %v488 = vmax.f32 %v348, 0.0
      %v489 = vmax.f32 %v349, 0.0
      %v490 = vmax.f32 %v350, 0.0
      %v491 = vmax.f32 %v351, 0.0
      %v492 = vmax.f32 %v352, 0.0
      %v493 = vmax.f32 %v353, 0.0
      %v494 = vmax.f32 %v354, 0.0
      %v495 = vmax.f32 %v355, 0.0
      %v496 = vmax.f32 %v356, 0.0
      %v497 = vmax.f32 %v357, 0.0
      %v498 = vmax.f32 %v358, 0.0
      %v499 = vmax.f32 %v359, 0.0
      %v500 = vmax.f32 %v360, 0.0
      %v501 = vmax.f32 %v361, 0.0
      %v502 = vmax.f32 %v362, 0.0
      %v503 = vmax.f32 %v363, 0.0
      %v504 = vmax.f32 %v364, 0.0
      %v505 = vmax.f32 %v365, 0.0
      %v506 = vmax.f32 %v366, 0.0
      %v507 = vmax.f32 %v367, 0.0
      %v508 = vmax.f32 %v368, 0.0
      %v509 = vmax.f32 %v369, 0.0
      %v510 = vmax.f32 %v370, 0.0
      %v511 = vmax.f32 %v371, 0.0
      %v512 = vmax.f32 %v372, 0.0
      %v513 = vpack.c.bf16 %v374, %v373
      %v514 = vpack.c.bf16 %v376, %v375
      %v515 = vpack.c.bf16 %v378, %v377
      %v516 = vpack.c.bf16 %v380, %v379
      %v517 = vpack.c.bf16 %v382, %v381
      %v518 = vpack.c.bf16 %v384, %v383
      %v519 = vpack.c.bf16 %v386, %v385
      %v520 = vpack.c.bf16 %v388, %v387
      %v521 = vpack.c.bf16 %v390, %v389
      %v522 = vpack.c.bf16 %v392, %v391
      %v523 = vpack.c.bf16 %v394, %v393
      %v524 = vpack.c.bf16 %v396, %v395
      %v525 = vpack.c.bf16 %v398, %v397
      %v526 = vpack.c.bf16 %v400, %v399
      %v527 = vpack.c.bf16 %v402, %v401
      %v528 = vpack.c.bf16 %v404, %v403
      %v529 = vpack.c.bf16 %v406, %v405
      %v530 = vpack.c.bf16 %v408, %v407
      %v531 = vpack.c.bf16 %v410, %v409
      %v532 = vpack.c.bf16 %v412, %v411
      %v533 = vpack.c.bf16 %v414, %v413
      %v534 = vpack.c.bf16 %v416, %v415
      %v535 = vpack.c.bf16 %v418, %v417
      %v536 = vpack.c.bf16 %v420, %v419
      %v537 = vpack.c.bf16 %v422, %v421
      %v538 = vpack.c.bf16 %v424, %v423
      %v539 = vpack.c.bf16 %v426, %v425
      %v540 = vpack.c.bf16 %v428, %v427
      %v541 = vpack.c.bf16 %v430, %v429
      %v542 = vpack.c.bf16 %v432, %v431
      %v543 = vpack.c.bf16 %v434, %v433
      %v544 = vpack.c.bf16 %v436, %v435
      %v545 = vpack.c.bf16 %v438, %v437
      %v546 = vpack.c.bf16 %v440, %v439
      %v547 = vpack.c.bf16 %v442, %v441
      %v548 = vpack.c.bf16 %v444, %v443
      %v549 = vpack.c.bf16 %v446, %v445
      %v550 = vpack.c.bf16 %v448, %v447
      %v551 = vpack.c.bf16 %v450, %v449
      %v552 = vpack.c.bf16 %v452, %v451
      %v553 = vpack.c.bf16 %v454, %v453
      %v554 = vpack.c.bf16 %v456, %v455
      %v555 = vpack.c.bf16 %v458, %v457
      %v556 = vpack.c.bf16 %v460, %v459
      %v557 = vpack.c.bf16 %v462, %v461
      %v558 = vpack.c.bf16 %v464, %v463
      %v559 = vpack.c.bf16 %v466, %v465
      %v560 = vpack.c.bf16 %v468, %v467
      %v561 = vpack.c.bf16 %v470, %v469
      %v562 = vpack.c.bf16 %v472, %v471
      %v563 = vpack.c.bf16 %v474, %v473
      %v564 = vpack.c.bf16 %v476, %v475
      %v565 = vpack.c.bf16 %v478, %v477
      %v566 = vpack.c.bf16 %v480, %v479
      %v567 = vpack.c.bf16 %v482, %v481
      %v568 = vpack.c.bf16 %v484, %v483
      %v569 = vpack.c.bf16 %v486, %v485
      %v570 = vpack.c.bf16 %v488, %v487
      %v571 = vpack.c.bf16 %v490, %v489
      %v572 = vpack.c.bf16 %v492, %v491
      %v573 = vpack.c.bf16 %v494, %v493
      %v574 = vpack.c.bf16 %v496, %v495
      %v575 = vpack.c.bf16 %v498, %v497
      %v576 = vpack.c.bf16 %v500, %v499
      %v577 = vpack.c.bf16 %v502, %v501
      %v578 = vpack.c.bf16 %v504, %v503
      %v579 = vpack.c.bf16 %v506, %v505
      %v580 = vpack.c.bf16 %v508, %v507
      %v581 = vpack.c.bf16 %v510, %v509
      %v582 = vpack.c.bf16 %v512, %v511
      %v623 = vunpack.c.l.b16 %v193
      %v624 = vunpack.c.h.b16 %v193
      %v625 = vunpack.c.l.b16 %v194
      %v626 = vunpack.c.h.b16 %v194
      %v627 = vunpack.c.l.b16 %v195
      %v628 = vunpack.c.h.b16 %v195
      %v629 = vunpack.c.l.b16 %v196
      %v630 = vunpack.c.h.b16 %v196
      %v631 = vunpack.c.l.b16 %v197
      %v632 = vunpack.c.l.b16 %v198
      %v633 = vunpack.c.h.b16 %v198
      %v634 = vunpack.c.l.b16 %v199
      %v635 = vunpack.c.h.b16 %v199
      %v636 = vunpack.c.l.b16 %v200
      %v637 = vunpack.c.h.b16 %v200
      %v638 = vunpack.c.l.b16 %v201
      %v639 = vunpack.c.h.b16 %v201
      %v640 = vunpack.c.l.b16 %v202
      %v641 = vunpack.c.l.b16 %v203
      %v642 = vunpack.c.h.b16 %v203
      %v643 = vunpack.c.l.b16 %v204
      %v644 = vunpack.c.h.b16 %v204
      %v645 = vunpack.c.l.b16 %v205
      %v646 = vunpack.c.h.b16 %v205
      %v647 = vunpack.c.l.b16 %v206
      %v648 = vunpack.c.h.b16 %v206
      %v649 = vunpack.c.l.b16 %v207
      %v650 = vunpack.c.l.b16 %v208
      %v651 = vunpack.c.h.b16 %v208
      %v652 = vunpack.c.l.b16 %v209
      %v653 = vunpack.c.h.b16 %v209
      %v654 = vunpack.c.l.b16 %v210
      %v655 = vunpack.c.h.b16 %v210
      %v656 = vunpack.c.l.b16 %v211
      %v657 = vunpack.c.h.b16 %v211
      %v658 = vunpack.c.l.b16 %v212
      %v659 = vunpack.c.l.b16 %v213
      %v660 = vunpack.c.h.b16 %v213
      %v661 = vunpack.c.l.b16 %v214
      %v662 = vunpack.c.h.b16 %v214
      %v663 = vunpack.c.l.b16 %v215
      %v664 = vunpack.c.h.b16 %v215
      %v665 = vunpack.c.l.b16 %v216
      %v666 = vunpack.c.h.b16 %v216
      %v667 = vunpack.c.l.b16 %v217
      %v668 = vunpack.c.l.b16 %v218
      %v669 = vunpack.c.h.b16 %v218
      %v670 = vunpack.c.l.b16 %v219
      %v671 = vunpack.c.h.b16 %v219
      %v672 = vunpack.c.l.b16 %v220
      %v673 = vunpack.c.h.b16 %v220
      %v674 = vunpack.c.l.b16 %v221
      %v675 = vunpack.c.h.b16 %v221
      %v676 = vunpack.c.l.b16 %v222
      %v677 = vunpack.c.l.b16 %v223
      %v678 = vunpack.c.h.b16 %v223
      %v679 = vunpack.c.l.b16 %v224
      %v680 = vunpack.c.h.b16 %v224
      %v681 = vunpack.c.l.b16 %v225
      %v682 = vunpack.c.h.b16 %v225
      %v683 = vunpack.c.l.b16 %v226
      %v684 = vunpack.c.h.b16 %v226
      %v685 = vunpack.c.l.b16 %v227
      %v686 = vunpack.c.l.b16 %v228
      %v687 = vunpack.c.h.b16 %v228
      %v688 = vunpack.c.l.b16 %v229
      %v689 = vunpack.c.h.b16 %v229
      %v690 = vunpack.c.l.b16 %v230
      %v691 = vunpack.c.h.b16 %v230
      %v692 = vunpack.c.l.b16 %v231
      %v693 = vunpack.c.h.b16 %v231
      %v694 = vunpack.c.l.b16 %v232
      %v695 = vpack.c.b16 %v632, %v623
      %v696 = vpack.c.b16 %v633, %v624
      %v697 = vpack.c.b16 %v634, %v625
      %v698 = vpack.c.b16 %v635, %v626
      %v699 = vpack.c.b16 %v636, %v627
      %v700 = vpack.c.b16 %v637, %v628
      %v701 = vpack.c.b16 %v638, %v629
      %v702 = vpack.c.b16 %v639, %v630
      %v703 = vpack.c.b16 %v640, %v631
      %v704 = vpack.c.b16 %v650, %v641
      %v705 = vpack.c.b16 %v651, %v642
      %v706 = vpack.c.b16 %v652, %v643
      %v707 = vpack.c.b16 %v653, %v644
      %v708 = vpack.c.b16 %v654, %v645
      %v709 = vpack.c.b16 %v655, %v646
      %v710 = vpack.c.b16 %v656, %v647
      %v711 = vpack.c.b16 %v657, %v648
      %v712 = vpack.c.b16 %v658, %v649
      %v713 = vpack.c.b16 %v668, %v659
      %v714 = vpack.c.b16 %v669, %v660
      %v715 = vpack.c.b16 %v670, %v661
      %v716 = vpack.c.b16 %v671, %v662
      %v717 = vpack.c.b16 %v672, %v663
      %v718 = vpack.c.b16 %v673, %v664
      %v719 = vpack.c.b16 %v674, %v665
      %v720 = vpack.c.b16 %v675, %v666
      %v721 = vpack.c.b16 %v676, %v667
      %v722 = vpack.c.b16 %v686, %v677
      %v723 = vpack.c.b16 %v687, %v678
      %v724 = vpack.c.b16 %v688, %v679
      %v725 = vpack.c.b16 %v689, %v680
      %v726 = vpack.c.b16 %v690, %v681
      %v727 = vpack.c.b16 %v691, %v682
      %v728 = vpack.c.b16 %v692, %v683
      %v729 = vpack.c.b16 %v693, %v684
      %v730 = vpack.c.b16 %v694, %v685
      %vm763 = vcmask 785408
      %v765 = vsel %vm763, %v703, 0
      %v768 = vsel %vm763, %v712, 0
      %v771 = vsel %vm763, %v721, 0
      %v774 = vsel %vm763, %v730, 0
      %776 = vmatprep.subr.bf16.mxu0 0
      %777 = vmatpush1.bf16.msra.mxu0 %v520
      %778 = vmatprep.subr.bf16.mxu0 0
      %779 = vmatpush1.bf16.msra.mxu0 %v519
      %780 = vmatprep.subr.bf16.mxu0 0
      %781 = vmatpush1.bf16.msra.mxu0 %v518
      %782 = vmatprep.subr.bf16.mxu0 0
      %783 = vmatpush1.bf16.msra.mxu0 %v517
      %784 = vmatprep.subr.bf16.mxu0 0
      %785 = vmatpush1.bf16.msra.mxu0 %v516
      %786 = vmatprep.subr.bf16.mxu0 0
      %787 = vmatpush1.bf16.msra.mxu0 %v515
      %788 = vmatprep.subr.bf16.mxu0 0
      %789 = vmatpush1.bf16.msra.mxu0 %v514
      %790 = vmatprep.subr.bf16.mxu0 0
      %791 = vmatpush1.bf16.msra.mxu0 %v513
      %792 = vmatprep.subr.bf16.mxu0 0
      %793 = vmatpush2.bf16.msra.mxu0 %v528
      %794 = vmatprep.subr.bf16.mxu0 0
      %795 = vmatpush2.bf16.msra.mxu0 %v527
      %796 = vmatprep.subr.bf16.mxu0 0
      %797 = vmatpush2.bf16.msra.mxu0 %v526
      %798 = vmatprep.subr.bf16.mxu0 0
      %799 = vmatpush2.bf16.msra.mxu0 %v525
      %800 = vmatprep.subr.bf16.mxu0 0
      %801 = vmatpush2.bf16.msra.mxu0 %v524
      %802 = vmatprep.subr.bf16.mxu0 0
      %803 = vmatpush2.bf16.msra.mxu0 %v523
      %804 = vmatprep.subr.bf16.mxu0 0
      %805 = vmatpush2.bf16.msra.mxu0 %v522
      %806 = vmatprep.subr.bf16.mxu0 0
      %807 = vmatpush2.bf16.msra.mxu0 %v521
      %808 = vmatprep.mubr.bf16.mxu0 %v696
      %809 = vmatmul.mubr.bf16.gmra.mxu0 %v695
      %v810 = vpop.f32.mrf.mxu0
      %v811 = vadd.f32 0.0, %v810
      %v812 = vpop.f32.mrf.mxu0
      %v813 = vpop.f32.mrf.mxu0
      %v814 = vadd.f32 0.0, %v813
      %v815 = vpop.f32.mrf.mxu0
      %816 = vmatprep.mubr.bf16.mxu0 %v705
      %817 = vmatmul.mubr.bf16.gmra.mxu0 %v704
      %v818 = vpop.f32.mrf.mxu0
      %v819 = vadd.f32 0.0, %v818
      %v820 = vpop.f32.mrf.mxu0
      %v821 = vpop.f32.mrf.mxu0
      %v822 = vadd.f32 0.0, %v821
      %v823 = vpop.f32.mrf.mxu0
      %824 = vmatprep.mubr.bf16.mxu0 %v714
      %825 = vmatmul.mubr.bf16.gmra.mxu0 %v713
      %v826 = vpop.f32.mrf.mxu0
      %v827 = vadd.f32 0.0, %v826
      %v828 = vpop.f32.mrf.mxu0
      %v829 = vpop.f32.mrf.mxu0
      %v830 = vadd.f32 0.0, %v829
      %v831 = vpop.f32.mrf.mxu0
      %832 = vmatprep.mubr.bf16.mxu0 %v723
      %833 = vmatmul.mubr.bf16.gmra.mxu0 %v722
      %v834 = vpop.f32.mrf.mxu0
      %v835 = vadd.f32 0.0, %v834
      %v836 = vpop.f32.mrf.mxu0
      %v837 = vpop.f32.mrf.mxu0
      %v838 = vadd.f32 0.0, %v837
      %v839 = vpop.f32.mrf.mxu0
      %840 = vdwg.mxu0
      %841 = vmatprep.subr.bf16.mxu0 0
      %842 = vmatpush1.bf16.msra.mxu0 %v536
      %843 = vmatprep.subr.bf16.mxu0 0
      %844 = vmatpush1.bf16.msra.mxu0 %v535
      %845 = vmatprep.subr.bf16.mxu0 0
      %846 = vmatpush1.bf16.msra.mxu0 %v534
      %847 = vmatprep.subr.bf16.mxu0 0
      %848 = vmatpush1.bf16.msra.mxu0 %v533
      %849 = vmatprep.subr.bf16.mxu0 0
      %850 = vmatpush1.bf16.msra.mxu0 %v532
      %851 = vmatprep.subr.bf16.mxu0 0
      %852 = vmatpush1.bf16.msra.mxu0 %v531
      %853 = vmatprep.subr.bf16.mxu0 0
      %854 = vmatpush1.bf16.msra.mxu0 %v530
      %855 = vmatprep.subr.bf16.mxu0 0
      %856 = vmatpush1.bf16.msra.mxu0 %v529
      %857 = vmatprep.subr.bf16.mxu0 0
      %858 = vmatpush2.bf16.msra.mxu0 %v544
      %859 = vmatprep.subr.bf16.mxu0 0
      %860 = vmatpush2.bf16.msra.mxu0 %v543
      %861 = vmatprep.subr.bf16.mxu0 0
      %862 = vmatpush2.bf16.msra.mxu0 %v542
      %863 = vmatprep.subr.bf16.mxu0 0
      %864 = vmatpush2.bf16.msra.mxu0 %v541
      %865 = vmatprep.subr.bf16.mxu0 0
      %866 = vmatpush2.bf16.msra.mxu0 %v540
      %867 = vmatprep.subr.bf16.mxu0 0
      %868 = vmatpush2.bf16.msra.mxu0 %v539
      %869 = vmatprep.subr.bf16.mxu0 0
      %870 = vmatpush2.bf16.msra.mxu0 %v538
      %871 = vmatprep.subr.bf16.mxu0 0
      %872 = vmatpush2.bf16.msra.mxu0 %v537
      %873 = vmatprep.mubr.bf16.mxu0 %v698
      %874 = vmatmul.mubr.bf16.gmra.mxu0 %v697
      %v875 = vpop.f32.mrf.mxu0
      %v876 = vadd.f32 %v811, %v875
      %v877 = vpop.f32.mrf.mxu0
      %v878 = vpop.f32.mrf.mxu0
      %v879 = vadd.f32 %v814, %v878
      %v880 = vpop.f32.mrf.mxu0
      %881 = vmatprep.mubr.bf16.mxu0 %v707
      %882 = vmatmul.mubr.bf16.gmra.mxu0 %v706
      %v883 = vpop.f32.mrf.mxu0
      %v884 = vadd.f32 %v819, %v883
      %v885 = vpop.f32.mrf.mxu0
      %v886 = vpop.f32.mrf.mxu0
      %v887 = vadd.f32 %v822, %v886
      %v888 = vpop.f32.mrf.mxu0
      %889 = vmatprep.mubr.bf16.mxu0 %v716
      %890 = vmatmul.mubr.bf16.gmra.mxu0 %v715
      %v891 = vpop.f32.mrf.mxu0
      %v892 = vadd.f32 %v827, %v891
      %v893 = vpop.f32.mrf.mxu0
      %v894 = vpop.f32.mrf.mxu0
      %v895 = vadd.f32 %v830, %v894
      %v896 = vpop.f32.mrf.mxu0
      %897 = vmatprep.mubr.bf16.mxu0 %v725
      %898 = vmatmul.mubr.bf16.gmra.mxu0 %v724
      %v899 = vpop.f32.mrf.mxu0
      %v900 = vadd.f32 %v835, %v899
      %v901 = vpop.f32.mrf.mxu0
      %v902 = vpop.f32.mrf.mxu0
      %v903 = vadd.f32 %v838, %v902
      %v904 = vpop.f32.mrf.mxu0
      %905 = vdwg.mxu0
      %906 = vmatprep.subr.bf16.mxu0 0
      %907 = vmatpush1.bf16.msra.mxu0 %v552
      %908 = vmatprep.subr.bf16.mxu0 0
      %909 = vmatpush1.bf16.msra.mxu0 %v551
      %910 = vmatprep.subr.bf16.mxu0 0
      %911 = vmatpush1.bf16.msra.mxu0 %v550
      %912 = vmatprep.subr.bf16.mxu0 0
      %913 = vmatpush1.bf16.msra.mxu0 %v549
      %914 = vmatprep.subr.bf16.mxu0 0
      %915 = vmatpush1.bf16.msra.mxu0 %v548
      %916 = vmatprep.subr.bf16.mxu0 0
      %917 = vmatpush1.bf16.msra.mxu0 %v547
      %918 = vmatprep.subr.bf16.mxu0 0
      %919 = vmatpush1.bf16.msra.mxu0 %v546
      %920 = vmatprep.subr.bf16.mxu0 0
      %921 = vmatpush1.bf16.msra.mxu0 %v545
      %922 = vmatprep.subr.bf16.mxu0 0
      %923 = vmatpush2.bf16.msra.mxu0 %v560
      %924 = vmatprep.subr.bf16.mxu0 0
      %925 = vmatpush2.bf16.msra.mxu0 %v559
      %926 = vmatprep.subr.bf16.mxu0 0
      %927 = vmatpush2.bf16.msra.mxu0 %v558
      %928 = vmatprep.subr.bf16.mxu0 0
      %929 = vmatpush2.bf16.msra.mxu0 %v557
      %930 = vmatprep.subr.bf16.mxu0 0
      %931 = vmatpush2.bf16.msra.mxu0 %v556
      %932 = vmatprep.subr.bf16.mxu0 0
      %933 = vmatpush2.bf16.msra.mxu0 %v555
      %934 = vmatprep.subr.bf16.mxu0 0
      %935 = vmatpush2.bf16.msra.mxu0 %v554
      %936 = vmatprep.subr.bf16.mxu0 0
      %937 = vmatpush2.bf16.msra.mxu0 %v553
      %938 = vmatprep.mubr.bf16.mxu0 %v700
      %939 = vmatmul.mubr.bf16.gmra.mxu0 %v699
      %v940 = vpop.f32.mrf.mxu0
      %v941 = vadd.f32 %v876, %v940
      %v942 = vpop.f32.mrf.mxu0
      %v943 = vpop.f32.mrf.mxu0
      %v944 = vadd.f32 %v879, %v943
      %v945 = vpop.f32.mrf.mxu0
      %946 = vmatprep.mubr.bf16.mxu0 %v709
      %947 = vmatmul.mubr.bf16.gmra.mxu0 %v708
      %v948 = vpop.f32.mrf.mxu0
      %v949 = vadd.f32 %v884, %v948
      %v950 = vpop.f32.mrf.mxu0
      %v951 = vpop.f32.mrf.mxu0
      %v952 = vadd.f32 %v887, %v951
      %v953 = vpop.f32.mrf.mxu0
      %954 = vmatprep.mubr.bf16.mxu0 %v718
      %955 = vmatmul.mubr.bf16.gmra.mxu0 %v717
      %v956 = vpop.f32.mrf.mxu0
      %v957 = vadd.f32 %v892, %v956
      %v958 = vpop.f32.mrf.mxu0
      %v959 = vpop.f32.mrf.mxu0
      %v960 = vadd.f32 %v895, %v959
      %v961 = vpop.f32.mrf.mxu0
      %962 = vmatprep.mubr.bf16.mxu0 %v727
      %963 = vmatmul.mubr.bf16.gmra.mxu0 %v726
      %v964 = vpop.f32.mrf.mxu0
      %v965 = vadd.f32 %v900, %v964
      %v966 = vpop.f32.mrf.mxu0
      %v967 = vpop.f32.mrf.mxu0
      %v968 = vadd.f32 %v903, %v967
      %v969 = vpop.f32.mrf.mxu0
      %970 = vdwg.mxu0
      %971 = vmatprep.subr.bf16.mxu0 0
      %972 = vmatpush1.bf16.msra.mxu0 %v568
      %973 = vmatprep.subr.bf16.mxu0 0
      %974 = vmatpush1.bf16.msra.mxu0 %v567
      %975 = vmatprep.subr.bf16.mxu0 0
      %976 = vmatpush1.bf16.msra.mxu0 %v566
      %977 = vmatprep.subr.bf16.mxu0 0
      %978 = vmatpush1.bf16.msra.mxu0 %v565
      %979 = vmatprep.subr.bf16.mxu0 0
      %980 = vmatpush1.bf16.msra.mxu0 %v564
      %981 = vmatprep.subr.bf16.mxu0 0
      %982 = vmatpush1.bf16.msra.mxu0 %v563
      %983 = vmatprep.subr.bf16.mxu0 0
      %984 = vmatpush1.bf16.msra.mxu0 %v562
      %985 = vmatprep.subr.bf16.mxu0 0
      %986 = vmatpush1.bf16.msra.mxu0 %v561
      %987 = vmatprep.subr.bf16.mxu0 0
      %988 = vmatpush2.bf16.msra.mxu0 %v576
      %989 = vmatprep.subr.bf16.mxu0 0
      %990 = vmatpush2.bf16.msra.mxu0 %v575
      %991 = vmatprep.subr.bf16.mxu0 0
      %992 = vmatpush2.bf16.msra.mxu0 %v574
      %993 = vmatprep.subr.bf16.mxu0 0
      %994 = vmatpush2.bf16.msra.mxu0 %v573
      %995 = vmatprep.subr.bf16.mxu0 0
      %996 = vmatpush2.bf16.msra.mxu0 %v572
      %997 = vmatprep.subr.bf16.mxu0 0
      %998 = vmatpush2.bf16.msra.mxu0 %v571
      %999 = vmatprep.subr.bf16.mxu0 0
      %1000 = vmatpush2.bf16.msra.mxu0 %v570
      %1001 = vmatprep.subr.bf16.mxu0 0
      %1002 = vmatpush2.bf16.msra.mxu0 %v569
      %1003 = vmatprep.mubr.bf16.mxu0 %v702
      %1004 = vmatmul.mubr.bf16.gmra.mxu0 %v701
      %v1005 = vpop.f32.mrf.mxu0
      %v1006 = vadd.f32 %v941, %v1005
      %v1007 = vpop.f32.mrf.mxu0
      %v1008 = vpop.f32.mrf.mxu0
      %v1009 = vadd.f32 %v944, %v1008
      %v1010 = vpop.f32.mrf.mxu0
      %1011 = vmatprep.mubr.bf16.mxu0 %v711
      %1012 = vmatmul.mubr.bf16.gmra.mxu0 %v710
      %v1013 = vpop.f32.mrf.mxu0
      %v1014 = vadd.f32 %v949, %v1013
      %v1015 = vpop.f32.mrf.mxu0
      %v1016 = vpop.f32.mrf.mxu0
      %v1017 = vadd.f32 %v952, %v1016
      %v1018 = vpop.f32.mrf.mxu0
      %1019 = vmatprep.mubr.bf16.mxu0 %v720
      %1020 = vmatmul.mubr.bf16.gmra.mxu0 %v719
      %v1021 = vpop.f32.mrf.mxu0
      %v1022 = vadd.f32 %v957, %v1021
      %v1023 = vpop.f32.mrf.mxu0
      %v1024 = vpop.f32.mrf.mxu0
      %v1025 = vadd.f32 %v960, %v1024
      %v1026 = vpop.f32.mrf.mxu0
      %1027 = vmatprep.mubr.bf16.mxu0 %v729
      %1028 = vmatmul.mubr.bf16.gmra.mxu0 %v728
      %v1029 = vpop.f32.mrf.mxu0
      %v1030 = vadd.f32 %v965, %v1029
      %v1031 = vpop.f32.mrf.mxu0
      %v1032 = vpop.f32.mrf.mxu0
      %v1033 = vadd.f32 %v968, %v1032
      %v1034 = vpop.f32.mrf.mxu0
      %1035 = vdwg.mxu0
      %1036 = vmatprep.subr.bf16.mxu0 0
      %1037 = vmatpush1.bf16.msra.mxu0 0
      %1038 = vmatprep.subr.bf16.mxu0 0
      %1039 = vmatpush1.bf16.msra.mxu0 0
      %1040 = vmatprep.subr.bf16.mxu0 0
      %1041 = vmatpush1.bf16.msra.mxu0 %v582
      %1042 = vmatprep.subr.bf16.mxu0 0
      %1043 = vmatpush1.bf16.msra.mxu0 %v581
      %1044 = vmatprep.subr.bf16.mxu0 0
      %1045 = vmatpush1.bf16.msra.mxu0 %v580
      %1046 = vmatprep.subr.bf16.mxu0 0
      %1047 = vmatpush1.bf16.msra.mxu0 %v579
      %1048 = vmatprep.subr.bf16.mxu0 0
      %1049 = vmatpush1.bf16.msra.mxu0 %v578
      %1050 = vmatprep.subr.bf16.mxu0 0
      %1051 = vmatpush1.bf16.msra.mxu0 %v577
      %1052 = vmatprep.subr.bf16.mxu0 0
      %1053 = vmatpush2.bf16.msra.mxu0 0
      %1054 = vmatprep.subr.bf16.mxu0 0
      %1055 = vmatpush2.bf16.msra.mxu0 0
      %1056 = vmatprep.subr.bf16.mxu0 0
      %1057 = vmatpush2.bf16.msra.mxu0 0
      %1058 = vmatprep.subr.bf16.mxu0 0
      %1059 = vmatpush2.bf16.msra.mxu0 0
      %1060 = vmatprep.subr.bf16.mxu0 0
      %1061 = vmatpush2.bf16.msra.mxu0 0
      %1062 = vmatprep.subr.bf16.mxu0 0
      %1063 = vmatpush2.bf16.msra.mxu0 0
      %1064 = vmatprep.subr.bf16.mxu0 0
      %1065 = vmatpush2.bf16.msra.mxu0 0
      %1066 = vmatprep.subr.bf16.mxu0 0
      %1067 = vmatpush2.bf16.msra.mxu0 0
      %1068 = vmatprep.mubr.bf16.mxu0 0
      %1069 = vmatmul.mubr.bf16.gmra.mxu0 %v765
      %v1070 = vpop.f32.mrf.mxu0
      %v1071 = vadd.f32 %v1006, %v1070
      %v1072 = vpop.f32.mrf.mxu0
      %v1073 = vpop.f32.mrf.mxu0
      %v1074 = vadd.f32 %v1009, %v1073
      %v1075 = vpop.f32.mrf.mxu0
      %1076 = vmatprep.mubr.bf16.mxu0 0
      %1077 = vmatmul.mubr.bf16.gmra.mxu0 %v768
      %v1078 = vpop.f32.mrf.mxu0
      %v1079 = vadd.f32 %v1014, %v1078
      %v1080 = vpop.f32.mrf.mxu0
      %v1081 = vpop.f32.mrf.mxu0
      %v1082 = vadd.f32 %v1017, %v1081
      %v1083 = vpop.f32.mrf.mxu0
      %1084 = vmatprep.mubr.bf16.mxu0 0
      %1085 = vmatmul.mubr.bf16.gmra.mxu0 %v771
      %v1086 = vpop.f32.mrf.mxu0
      %v1087 = vadd.f32 %v1022, %v1086
      %v1088 = vpop.f32.mrf.mxu0
      %v1089 = vpop.f32.mrf.mxu0
      %v1090 = vadd.f32 %v1025, %v1089
      %v1091 = vpop.f32.mrf.mxu0
      %1092 = vmatprep.mubr.bf16.mxu0 0
      %1093 = vmatmul.mubr.bf16.gmra.mxu0 %v774
      %v1094 = vpop.f32.mrf.mxu0
      %v1095 = vadd.f32 %v1030, %v1094
      %v1096 = vpop.f32.mrf.mxu0
      %v1097 = vpop.f32.mrf.mxu0
      %v1098 = vadd.f32 %v1033, %v1097
      %v1099 = vpop.f32.mrf.mxu0
      %1100 = vdwg.mxu0
      %vm1101 = vcmask 400384
      %1102 = vst.msk [vmem:[%s190] sm:$0xff] %vm1101, %v1071
      %1103 = vst.msk [vmem:[%s190 + $0x8] sm:$0xff] %vm1101, %v1074
      %1104 = vst.msk [vmem:[%s190 + $0x10] sm:$0xff] %vm1101, %v1079
      %1105 = vst.msk [vmem:[%s190 + $0x18] sm:$0xff] %vm1101, %v1082
      %1106 = vst.msk [vmem:[%s190 + $0x20] sm:$0xff] %vm1101, %v1087
      %1107 = vst.msk [vmem:[%s190 + $0x28] sm:$0xff] %vm1101, %v1090
      %1108 = vst.msk [vmem:[%s190 + $0x30] sm:$0xff] %vm1101, %v1095
      %1109 = vst.msk [vmem:[%s190 + $0x38] sm:$0xff] %vm1101, %v1098
      %s1110 = smul.u32 8, %s18
      %p1111 = scmp.lt.s32.totalorder %s17, 0
      %s1112 = scalar_select %p1111, %s17, 0
      %p1113 = scmp.lt.s32.totalorder %s1110, 15
      %s1114 = scalar_select %p1113, %s1110, 15
      %s1115 = smul.addr %s1112, 16
      %s1116 = sadd.s32 %s1114, %s1115
      %s1117 = smul.addr %s1116, 8
      %s1118 = scalar_lea.vmem %s2, %s1117
      // Predicated region
      $region29: #{relu_conv1x1.1} parent=27 // pred_check
        %p1119 = pneg %p97
      $region30: #{relu_conv1x1.1} parent=27 // pred_check_branch
        %1121 = sbr.rel (%p1119) target = $region32
      $region31: #{relu_conv1x1.1} parent=27 // pred_region
        %s1122 = smul.u32 8, %s18
      $region32: #{relu_conv1x1.1} parent=27 // pred_fallthru
        _
    $region28: #{relu_conv1x1.1} parent=5 // pred_fallthru
      _
    %p1123 = scmp.le.s32.totalorder 2, %s8
    // Predicated region
    $region33: #{relu_conv1x1.1} parent=5 // pred_check
      %p1124 = pneg %p1123
    $region34: #{relu_conv1x1.1} parent=5 // pred_check_branch
      %1126 = sbr.rel (%p1124) target = $region36
    $region35: #{relu_conv1x1.1} parent=5 // pred_region
      %s1127 = ssub.s32 %s8, 2
      // Predicated region
      $region37: #{relu_conv1x1.1} parent=35 // pred_check
        %p1128 = pneg %p103
      $region38: #{relu_conv1x1.1} parent=35 // pred_check_branch
        %1130 = sbr.rel (%p1128) target = $region40
      $region39: #{relu_conv1x1.1} parent=35 // pred_region
        %s1131 = smul.u32 8, %s20
        %p1132 = scmp.lt.s32.totalorder %s19, 0
        %s1133 = scalar_select %p1132, %s19, 0
        %p1134 = scmp.lt.s32.totalorder %s1131, 15
        %s1135 = scalar_select %p1134, %s1131, 15
        %s1136 = smul.addr %s1133, 16
        %s1137 = sadd.s32 %s1135, %s1136
        %s1138 = smul.addr %s1137, 8
        %s1139 = scalar_lea.vmem %s2, %s1138
      $region40: #{relu_conv1x1.1} parent=35 // pred_fallthru
        _
    $region36: #{relu_conv1x1.1} parent=5 // pred_fallthru
      _
  $region6: #{relu_conv1x1.1} parent=0 // loop_footer
    %s12 = sadd.s32 1, %s8
  $region7: #{relu_conv1x1.1} parent=0 // loop_footer_branch
    %7 = sbr.rel target = $region3
  $region8: #{relu_conv1x1.1} parent=0 // loop_exit
    _

</llo_original>
